<compile_context>
chip_gen: v5e
topology: v5e:2x2
jax: 0.10.0
libtpu: 0.0.40
codegen_flags: <defaults>
</compile_context>

<pallas_src>
from functools import partial

import jax
import jax.numpy as jnp
from jax.experimental import pallas as pl
from jax.experimental.pallas import tpu as pltpu


# ------------------------------ Pallas kernel ------------------------------ #

def _fused_basic_block_kernel(x_ref, w1_ref, b1_ref, w2_ref, b2_ref, o_ref,
                              pad_ref, *, H, W, compute_dtype):
    """conv3x3+BN+ReLU -> conv3x3+BN -> +identity -> ReLU for one image.

    Layout: channels on sublanes, flattened H*W on lanes (lane-dense stores).
      x_ref:   (1, C, H*W)   f32            conv1 input and residual
      w*_ref:  (3, Co, 3*Ci) compute_dtype  BN-scale folded, columns ordered (dx, ci)
      b*_ref:  (Co, 1)       f32            folded BN bias
      pad_ref: (C, H*W + 2*PAD) compute_dtype persistent halo scratch, reused by
               conv1 (holds x) and conv2 (holds y1).
    """
    HW = H * W
    C = pad_ref.shape[0]
    PAD = (pad_ref.shape[-1] - HW) // 2        # lane-aligned halo, >= W + 2

    x = x_ref[0]                               # (C, HW) f32

    # Column-edge masks (in-kernel): zero the taps whose +/-1 lane shift would
    # wrap across a row boundary.
    col = jax.lax.broadcasted_iota(jnp.int32, (1, HW), 1) % W
    m_first = (col != 0).astype(compute_dtype)         # kills dx == 0 taps at col 0
    m_last = (col != (W - 1)).astype(compute_dtype)    # kills dx == 2 taps at col W-1

    # Re-zero the (tiny) halo every step instead of gating on step == 0: keeps
    # the scratch valid even when the parallel batch axis is split across cores.
    zeros_halo = jnp.zeros((C, PAD), compute_dtype)
    pad_ref[:, :PAD] = zeros_halo
    pad_ref[:, PAD + HW:PAD + HW + PAD] = zeros_halo

    def conv3x3(w_ref):
        """3x3 conv of the image resident in pad_ref's interior -> (Co, HW) f32."""
        xp = pad_ref[...]                      # (C, HW + 2*PAD) compute_dtype
        acc = None
        for dy in range(3):                    # one MXU contraction per kernel row
            slabs = []
            for dx in range(3):
                start = PAD + (dy - 1) * W + (dx - 1)
                s = xp[:, start:start + HW]    # lane-shifted tap, already compute_dtype
                if dx == 0:
                    s = s * m_first            # left edge -> 0
                elif dx == 2:
                    s = s * m_last             # right edge -> 0
                slabs.append(s)
            patches = jnp.concatenate(slabs, axis=0)        # (3*C, HW) compute_dtype
            part = jnp.dot(w_ref[dy], patches,
                           preferred_element_type=jnp.float32)
            acc = part if acc is None else acc + part
        return acc                             # (Co, HW) f32

    # conv1 + bn1 + relu: intermediate never leaves VMEM/vregs.
    pad_ref[:, PAD:PAD + HW] = x.astype(compute_dtype)
    y1 = jnp.maximum(conv3x3(w1_ref) + b1_ref[...], 0.0)

    # conv2 + bn2 + residual + relu (scratch reused for y1); lane-dense store.
    pad_ref[:, PAD:PAD + HW] = y1.astype(compute_dtype)
    y2 = conv3x3(w2_ref) + b2_ref[...]
    o_ref[0] = jnp.maximum(y2 + x, 0.0).astype(o_ref.dtype)


# --------------------------------- wrapper --------------------------------- #

def _fold_bn(gamma, beta, mean, var, eps=1e-5):
    scale = gamma / jnp.sqrt(var + eps)
    return scale, beta - mean * scale


def basic_block_forward(x_nchw, params, *, compute_dtype=jnp.bfloat16):
    """BasicBlock forward (stride=1, downsample=None). NCHW in / NCHW out.

    compute_dtype is the MXU operand dtype only (bf16 is a straight MXU win on
    v5e/v6e/v7x); accumulation and all elementwise math stay f32.
    """
    N, C, H, W = x_nchw.shape
    HW = H * W
    w1, w2 = params["w1"], params["w2"]                  # HWIO (3, 3, Cin, Cout)
    Cmid, Cout = w1.shape[-1], w2.shape[-1]
    assert Cout == C and Cmid == C, "identity skip requires inplanes == planes"
    assert C % 8 == 0, "channels must be a multiple of 8 (f32 sublane tile)"
    assert HW % 128 == 0, "H*W must be a multiple of 128 for lane-dense stores"

    s1, b1 = _fold_bn(*params["bn1"])
    s2, b2 = _fold_bn(*params["bn2"])

    # HWIO (dy, dx, ci, co) -> (dy, co, dx*Ci + ci); fold the BN scale into the
    # weight rows and cast to the MXU compute dtype ONCE here (not per grid step).
    def pack_w(w, scale, ci):
        wt = jnp.transpose(w, (0, 3, 1, 2)).reshape(3, w.shape[-1], 3 * ci)
        return (wt * scale[None, :, None]).astype(compute_dtype)

    w1m = pack_w(w1, s1, C)                              # (3, Cmid, 3*C)
    w2m = pack_w(w2, s2, Cmid)                           # (3, Cout, 3*Cmid)
    b1c = b1.astype(jnp.float32)[:, None]                # (Cmid, 1)
    b2c = b2.astype(jnp.float32)[:, None]                # (Cout, 1)

    x_flat = x_nchw.reshape(N, C, HW)        # free: contiguous NCHW reshape

    PAD = ((W + 2 + 127) // 128) * 128       # lane-aligned halo width

    kernel = partial(_fused_basic_block_kernel, H=H, W=W,
                     compute_dtype=compute_dtype)

    out = pl.pallas_call(
        kernel,
        out_shape=jax.ShapeDtypeStruct((N, Cout, HW), jnp.float32),
        grid=(N,),
        in_specs=[
            pl.BlockSpec((1, C, HW), lambda n: (n, 0, 0)),           # x (+ residual)
            pl.BlockSpec((3, Cmid, 3 * C), lambda n: (0, 0, 0)),     # w1 (folded, cd)
            pl.BlockSpec((Cmid, 1), lambda n: (0, 0)),               # bn1 bias (f32)
            pl.BlockSpec((3, Cout, 3 * Cmid), lambda n: (0, 0, 0)),  # w2 (folded, cd)
            pl.BlockSpec((Cout, 1), lambda n: (0, 0)),               # bn2 bias (f32)
        ],
        out_specs=pl.BlockSpec((1, Cout, HW), lambda n: (n, 0, 0)),
        scratch_shapes=[pltpu.VMEM((C, HW + 2 * PAD), compute_dtype)],
        compiler_params=pltpu.CompilerParams(
            dimension_semantics=("parallel",),
            # Above the 16/32 MiB scoped defaults, below v7x's 64 MiB physical.
            vmem_limit_bytes=48 * 1024 * 1024),
    )(x_flat, w1m, b1c, w2m, b2c)

    return out.reshape(N, Cout, H, W)        # (N, C, H*W) -> NCHW, free


# -------------------------------- reference --------------------------------- #

def _reference(x_nchw, params, eps=1e-5):
    def conv(x, w):
        return jax.lax.conv_general_dilated(
            x, w, window_strides=(1, 1), padding=((1, 1), (1, 1)),
            dimension_numbers=("NCHW", "HWIO", "NCHW"))

    def bn(x, g, b, m, v):
        g, b, m, v = (a[None, :, None, None] for a in (g, b, m, v))
        return (x - m) / jnp.sqrt(v + eps) * g + b

    out = jax.nn.relu(bn(conv(x_nchw, params["w1"]), *params["bn1"]))
    out = bn(conv(out, params["w2"]), *params["bn2"]) + x_nchw
    return jax.nn.relu(out)


# ----------------------------------- main ------------------------------------ #

if __name__ == "__main__":
    # inplanes == planes so the identity skip needs no downsample.
    N, C, H, W = 2, 8, 16, 16
    planes = C

    key = jax.random.PRNGKey(0)
    kx, kw1, kw2, kg1, kb1, kg2, kb2, km1, kv1, km2, kv2 = jax.random.split(key, 11)

    x = jax.random.normal(kx, (N, C, H, W), jnp.float32)

    params = {
        "w1": 0.1 * jax.random.normal(kw1, (3, 3, C, planes), jnp.float32),
        "w2": 0.1 * jax.random.normal(kw2, (3, 3, planes, planes), jnp.float32),
        "bn1": (
            1.0 + 0.1 * jax.random.normal(kg1, (planes,), jnp.float32),   # gamma
            0.1 * jax.random.normal(kb1, (planes,), jnp.float32),         # beta
            0.1 * jax.random.normal(km1, (planes,), jnp.float32),         # running_mean
            1.0 + 0.1 * jax.random.uniform(kv1, (planes,), jnp.float32),  # running_var
        ),
        "bn2": (
            1.0 + 0.1 * jax.random.normal(kg2, (planes,), jnp.float32),
            0.1 * jax.random.normal(kb2, (planes,), jnp.float32),
            0.1 * jax.random.normal(km2, (planes,), jnp.float32),
            1.0 + 0.1 * jax.random.uniform(kv2, (planes,), jnp.float32),
        ),
    }

    ref = jax.block_until_ready(_reference(x, params))

    # Exact-precision check: f32 MXU operands, tight tolerance.
    out_f32 = jax.block_until_ready(
        basic_block_forward(x, params, compute_dtype=jnp.float32))
    assert out_f32.shape == (N, planes, H, W), out_f32.shape
    assert jnp.allclose(out_f32, ref, atol=5e-4, rtol=5e-4), float(
        jnp.max(jnp.abs(out_f32 - ref)))

    # Default (production) path: bf16 MXU operands, f32 accumulation/elementwise.
    # bf16 operand rounding across two chained 3x3 convs -> loosened tolerance.
    out_bf16 = jax.block_until_ready(basic_block_forward(x, params))
    assert out_bf16.shape == (N, planes, H, W), out_bf16.shape
    assert jnp.allclose(out_bf16, ref, atol=1e-1, rtol=1e-1), float(
        jnp.max(jnp.abs(out_bf16 - ref)))

    print("KERNEL_OK")
</pallas_src>

<mosaic_0001>
module attributes {stable_mosaic.version = 11 : i64} {
  func.func @_fused_basic_block_kernel(%arg0: i32, %arg1: memref<1x8x256xf32, #tpu.memory_space<vmem>>, %arg2: memref<3x8x24xf32, #tpu.memory_space<vmem>>, %arg3: memref<8x1xf32, #tpu.memory_space<vmem>>, %arg4: memref<3x8x24xf32, #tpu.memory_space<vmem>>, %arg5: memref<8x1xf32, #tpu.memory_space<vmem>>, %arg6: memref<1x8x256xf32, #tpu.memory_space<vmem>>, %arg7: memref<8x512xf32, #tpu.memory_space<vmem>>) attributes {dimension_semantics = [#tpu.dimension_semantics<parallel>], iteration_bounds = array<i64: 2>, scalar_prefetch = 0 : i64, scratch_operands = 1 : i64, tpu.core_type = #tpu.core_type<tc>, window_params = [{transform_indices = @transform_0, window_bounds = array<i64: 1, 8, 256>}, {pipeline_mode = #tpu.pipeline_mode<synchronous>, transform_indices = @transform_1, window_bounds = array<i64: 3, 8, 24>}, {pipeline_mode = #tpu.pipeline_mode<synchronous>, transform_indices = @transform_2, window_bounds = array<i64: 8, 1>}, {pipeline_mode = #tpu.pipeline_mode<synchronous>, transform_indices = @transform_3, window_bounds = array<i64: 3, 8, 24>}, {pipeline_mode = #tpu.pipeline_mode<synchronous>, transform_indices = @transform_4, window_bounds = array<i64: 8, 1>}, {transform_indices = @transform_5, window_bounds = array<i64: 1, 8, 256>}]} {
    %c0 = arith.constant 0 : index
    %c0_0 = arith.constant 0 : index
    %c0_1 = arith.constant 0 : index
    %0 = vector.load %arg1[%c0, %c0_0, %c0_1] : memref<1x8x256xf32, #tpu.memory_space<vmem>>, vector<1x8x256xf32>
    %1 = vector.shape_cast %0 : vector<1x8x256xf32> to vector<8x256xf32>
    %2 = tpu.iota {dimensions = array<i32: 1>} : vector<1x256xi32>
    %c16_i32 = arith.constant 16 : i32
    %c0_i32 = arith.constant 0 : i32
    %3 = arith.cmpi eq, %c16_i32, %c0_i32 : i32
    %c1_i32 = arith.constant 1 : i32
    %4 = arith.select %3, %c1_i32, %c16_i32 : i32
    %5 = vector.broadcast %4 : i32 to vector<1x256xi32>
    %6 = arith.remsi %2, %5 : vector<1x256xi32>
    %c0_i32_2 = arith.constant 0 : i32
    %7 = vector.broadcast %c0_i32_2 : i32 to vector<1x256xi32>
    %8 = arith.cmpi ne, %6, %7 : vector<1x256xi32>
    %c0_i32_3 = arith.constant 0 : i32
    %9 = vector.broadcast %c0_i32_3 : i32 to vector<1x256xi32>
    %10 = arith.cmpi slt, %6, %9 : vector<1x256xi32>
    %c0_i32_4 = arith.constant 0 : i32
    %11 = arith.cmpi slt, %4, %c0_i32_4 : i32
    %12 = vector.broadcast %11 : i1 to vector<1x256xi1>
    %13 = vector.broadcast %12 : vector<1x256xi1> to vector<1x256xi1>
    %14 = arith.xori %10, %13 : vector<1x256xi1>
    %15 = arith.andi %14, %8 : vector<1x256xi1>
    %16 = vector.broadcast %4 : i32 to vector<1x256xi32>
    %17 = arith.addi %6, %16 : vector<1x256xi32>
    %18 = arith.select %15, %17, %6 : vector<1x256xi1>, vector<1x256xi32>
    %c0_i32_5 = arith.constant 0 : i32
    %19 = vector.broadcast %c0_i32_5 : i32 to vector<1x256xi32>
    %20 = arith.cmpi ne, %18, %19 : vector<1x256xi32>
    %21 = arith.extui %20 : vector<1x256xi1> to vector<1x256xi32>
    %22 = arith.sitofp %21 : vector<1x256xi32> to vector<1x256xf32>
    %c15_i32 = arith.constant 15 : i32
    %23 = vector.broadcast %c15_i32 : i32 to vector<1x256xi32>
    %24 = arith.cmpi ne, %18, %23 : vector<1x256xi32>
    %25 = arith.extui %24 : vector<1x256xi1> to vector<1x256xi32>
    %26 = arith.sitofp %25 : vector<1x256xi32> to vector<1x256xf32>
    %cst = arith.constant 0.000000e+00 : f32
    %27 = vector.broadcast %cst : f32 to vector<8x128xf32>
    %c0_6 = arith.constant 0 : index
    %c0_7 = arith.constant 0 : index
    %28 = vector.load %arg7[%c0_6, %c0_7] : memref<8x512xf32, #tpu.memory_space<vmem>>, vector<8x128xf32>
    tpu.vector_store %arg7[%c0_6, %c0_7], %27 {strides = array<i32>} : memref<8x512xf32, #tpu.memory_space<vmem>>, vector<8x128xf32>,
    %c0_8 = arith.constant 0 : index
    %c384 = arith.constant 384 : index
    %29 = vector.load %arg7[%c0_8, %c384] : memref<8x512xf32, #tpu.memory_space<vmem>>, vector<8x128xf32>
    tpu.vector_store %arg7[%c0_8, %c384], %27 {strides = array<i32>} : memref<8x512xf32, #tpu.memory_space<vmem>>, vector<8x128xf32>,
    %c0_9 = arith.constant 0 : index
    %c128 = arith.constant 128 : index
    %30 = vector.load %arg7[%c0_9, %c128] : memref<8x512xf32, #tpu.memory_space<vmem>>, vector<8x256xf32>
    tpu.vector_store %arg7[%c0_9, %c128], %1 {strides = array<i32>} : memref<8x512xf32, #tpu.memory_space<vmem>>, vector<8x256xf32>,
    %c0_10 = arith.constant 0 : index
    %c0_11 = arith.constant 0 : index
    %31 = vector.load %arg7[%c0_10, %c0_11] : memref<8x512xf32, #tpu.memory_space<vmem>>, vector<8x512xf32>
    %32 = vector.extract_strided_slice %31 {offsets = [0, 111], sizes = [8, 256], strides = [1, 1]} : vector<8x512xf32> to vector<8x256xf32>
    %33 = vector.broadcast %22 : vector<1x256xf32> to vector<8x256xf32>
    %34 = arith.mulf %32, %33 : vector<8x256xf32>
    %35 = vector.extract_strided_slice %31 {offsets = [0, 112], sizes = [8, 256], strides = [1, 1]} : vector<8x512xf32> to vector<8x256xf32>
    %36 = vector.extract_strided_slice %31 {offsets = [0, 113], sizes = [8, 256], strides = [1, 1]} : vector<8x512xf32> to vector<8x256xf32>
    %37 = vector.broadcast %26 : vector<1x256xf32> to vector<8x256xf32>
    %38 = arith.mulf %36, %37 : vector<8x256xf32>
    %39 = tpu.concatenate %34, %35, %38 in 0 : vector<8x256xf32>, vector<8x256xf32>, vector<8x256xf32> -> vector<24x256xf32>
    %c0_12 = arith.constant 0 : index
    %c0_13 = arith.constant 0 : index
    %c0_14 = arith.constant 0 : index
    %40 = vector.load %arg2[%c0_12, %c0_13, %c0_14] : memref<3x8x24xf32, #tpu.memory_space<vmem>>, vector<1x8x24xf32>
    %41 = vector.shape_cast %40 : vector<1x8x24xf32> to vector<8x24xf32>
    %cst_15 = arith.constant dense<0.000000e+00> : vector<8x256xf32>
    %42 = tpu.matmul %41, %39, %cst_15 {dimension_numbers = #tpu.dot_dimension_numbers<[1], [0], [0], [1], [0, 0, 1, 1], [], []>} : vector<8x24xf32>, vector<24x256xf32>, vector<8x256xf32> -> vector<8x256xf32>
    %43 = vector.extract_strided_slice %31 {offsets = [0, 127], sizes = [8, 256], strides = [1, 1]} : vector<8x512xf32> to vector<8x256xf32>
    %44 = vector.broadcast %22 : vector<1x256xf32> to vector<8x256xf32>
    %45 = arith.mulf %43, %44 : vector<8x256xf32>
    %46 = vector.extract_strided_slice %31 {offsets = [0, 128], sizes = [8, 256], strides = [1, 1]} : vector<8x512xf32> to vector<8x256xf32>
    %47 = vector.extract_strided_slice %31 {offsets = [0, 129], sizes = [8, 256], strides = [1, 1]} : vector<8x512xf32> to vector<8x256xf32>
    %48 = vector.broadcast %26 : vector<1x256xf32> to vector<8x256xf32>
    %49 = arith.mulf %47, %48 : vector<8x256xf32>
    %50 = tpu.concatenate %45, %46, %49 in 0 : vector<8x256xf32>, vector<8x256xf32>, vector<8x256xf32> -> vector<24x256xf32>
    %c1 = arith.constant 1 : index
    %c0_16 = arith.constant 0 : index
    %c0_17 = arith.constant 0 : index
    %51 = vector.load %arg2[%c1, %c0_16, %c0_17] : memref<3x8x24xf32, #tpu.memory_space<vmem>>, vector<1x8x24xf32>
    %52 = vector.shape_cast %51 : vector<1x8x24xf32> to vector<8x24xf32>
    %cst_18 = arith.constant dense<0.000000e+00> : vector<8x256xf32>
    %53 = tpu.matmul %52, %50, %cst_18 {dimension_numbers = #tpu.dot_dimension_numbers<[1], [0], [0], [1], [0, 0, 1, 1], [], []>} : vector<8x24xf32>, vector<24x256xf32>, vector<8x256xf32> -> vector<8x256xf32>
    %54 = arith.addf %42, %53 : vector<8x256xf32>
    %55 = vector.extract_strided_slice %31 {offsets = [0, 143], sizes = [8, 256], strides = [1, 1]} : vector<8x512xf32> to vector<8x256xf32>
    %56 = vector.broadcast %22 : vector<1x256xf32> to vector<8x256xf32>
    %57 = arith.mulf %55, %56 : vector<8x256xf32>
    %58 = vector.extract_strided_slice %31 {offsets = [0, 144], sizes = [8, 256], strides = [1, 1]} : vector<8x512xf32> to vector<8x256xf32>
    %59 = vector.extract_strided_slice %31 {offsets = [0, 145], sizes = [8, 256], strides = [1, 1]} : vector<8x512xf32> to vector<8x256xf32>
    %60 = vector.broadcast %26 : vector<1x256xf32> to vector<8x256xf32>
    %61 = arith.mulf %59, %60 : vector<8x256xf32>
    %62 = tpu.concatenate %57, %58, %61 in 0 : vector<8x256xf32>, vector<8x256xf32>, vector<8x256xf32> -> vector<24x256xf32>
    %c2 = arith.constant 2 : index
    %c0_19 = arith.constant 0 : index
    %c0_20 = arith.constant 0 : index
    %63 = vector.load %arg2[%c2, %c0_19, %c0_20] : memref<3x8x24xf32, #tpu.memory_space<vmem>>, vector<1x8x24xf32>
    %64 = vector.shape_cast %63 : vector<1x8x24xf32> to vector<8x24xf32>
    %cst_21 = arith.constant dense<0.000000e+00> : vector<8x256xf32>
    %65 = tpu.matmul %64, %62, %cst_21 {dimension_numbers = #tpu.dot_dimension_numbers<[1], [0], [0], [1], [0, 0, 1, 1], [], []>} : vector<8x24xf32>, vector<24x256xf32>, vector<8x256xf32> -> vector<8x256xf32>
    %66 = arith.addf %54, %65 : vector<8x256xf32>
    %c0_22 = arith.constant 0 : index
    %c0_23 = arith.constant 0 : index
    %67 = vector.load %arg3[%c0_22, %c0_23] : memref<8x1xf32, #tpu.memory_space<vmem>>, vector<8x1xf32>
    %68 = vector.broadcast %67 : vector<8x1xf32> to vector<8x256xf32>
    %69 = arith.addf %66, %68 : vector<8x256xf32>
    %cst_24 = arith.constant 0.000000e+00 : f32
    %70 = vector.broadcast %cst_24 : f32 to vector<8x256xf32>
    %71 = arith.maximumf %69, %70 : vector<8x256xf32>
    %c0_25 = arith.constant 0 : index
    %c128_26 = arith.constant 128 : index
    %72 = vector.load %arg7[%c0_25, %c128_26] : memref<8x512xf32, #tpu.memory_space<vmem>>, vector<8x256xf32>
    tpu.vector_store %arg7[%c0_25, %c128_26], %71 {strides = array<i32>} : memref<8x512xf32, #tpu.memory_space<vmem>>, vector<8x256xf32>,
    %c0_27 = arith.constant 0 : index
    %c0_28 = arith.constant 0 : index
    %73 = vector.load %arg7[%c0_27, %c0_28] : memref<8x512xf32, #tpu.memory_space<vmem>>, vector<8x512xf32>
    %74 = vector.extract_strided_slice %73 {offsets = [0, 111], sizes = [8, 256], strides = [1, 1]} : vector<8x512xf32> to vector<8x256xf32>
    %75 = vector.broadcast %22 : vector<1x256xf32> to vector<8x256xf32>
    %76 = arith.mulf %74, %75 : vector<8x256xf32>
    %77 = vector.extract_strided_slice %73 {offsets = [0, 112], sizes = [8, 256], strides = [1, 1]} : vector<8x512xf32> to vector<8x256xf32>
    %78 = vector.extract_strided_slice %73 {offsets = [0, 113], sizes = [8, 256], strides = [1, 1]} : vector<8x512xf32> to vector<8x256xf32>
    %79 = vector.broadcast %26 : vector<1x256xf32> to vector<8x256xf32>
    %80 = arith.mulf %78, %79 : vector<8x256xf32>
    %81 = tpu.concatenate %76, %77, %80 in 0 : vector<8x256xf32>, vector<8x256xf32>, vector<8x256xf32> -> vector<24x256xf32>
    %c0_29 = arith.constant 0 : index
    %c0_30 = arith.constant 0 : index
    %c0_31 = arith.constant 0 : index
    %82 = vector.load %arg4[%c0_29, %c0_30, %c0_31] : memref<3x8x24xf32, #tpu.memory_space<vmem>>, vector<1x8x24xf32>
    %83 = vector.shape_cast %82 : vector<1x8x24xf32> to vector<8x24xf32>
    %cst_32 = arith.constant dense<0.000000e+00> : vector<8x256xf32>
    %84 = tpu.matmul %83, %81, %cst_32 {dimension_numbers = #tpu.dot_dimension_numbers<[1], [0], [0], [1], [0, 0, 1, 1], [], []>} : vector<8x24xf32>, vector<24x256xf32>, vector<8x256xf32> -> vector<8x256xf32>
    %85 = vector.extract_strided_slice %73 {offsets = [0, 127], sizes = [8, 256], strides = [1, 1]} : vector<8x512xf32> to vector<8x256xf32>
    %86 = vector.broadcast %22 : vector<1x256xf32> to vector<8x256xf32>
    %87 = arith.mulf %85, %86 : vector<8x256xf32>
    %88 = vector.extract_strided_slice %73 {offsets = [0, 128], sizes = [8, 256], strides = [1, 1]} : vector<8x512xf32> to vector<8x256xf32>
    %89 = vector.extract_strided_slice %73 {offsets = [0, 129], sizes = [8, 256], strides = [1, 1]} : vector<8x512xf32> to vector<8x256xf32>
    %90 = vector.broadcast %26 : vector<1x256xf32> to vector<8x256xf32>
    %91 = arith.mulf %89, %90 : vector<8x256xf32>
    %92 = tpu.concatenate %87, %88, %91 in 0 : vector<8x256xf32>, vector<8x256xf32>, vector<8x256xf32> -> vector<24x256xf32>
    %c1_33 = arith.constant 1 : index
    %c0_34 = arith.constant 0 : index
    %c0_35 = arith.constant 0 : index
    %93 = vector.load %arg4[%c1_33, %c0_34, %c0_35] : memref<3x8x24xf32, #tpu.memory_space<vmem>>, vector<1x8x24xf32>
    %94 = vector.shape_cast %93 : vector<1x8x24xf32> to vector<8x24xf32>
    %cst_36 = arith.constant dense<0.000000e+00> : vector<8x256xf32>
    %95 = tpu.matmul %94, %92, %cst_36 {dimension_numbers = #tpu.dot_dimension_numbers<[1], [0], [0], [1], [0, 0, 1, 1], [], []>} : vector<8x24xf32>, vector<24x256xf32>, vector<8x256xf32> -> vector<8x256xf32>
    %96 = arith.addf %84, %95 : vector<8x256xf32>
    %97 = vector.extract_strided_slice %73 {offsets = [0, 143], sizes = [8, 256], strides = [1, 1]} : vector<8x512xf32> to vector<8x256xf32>
    %98 = vector.broadcast %22 : vector<1x256xf32> to vector<8x256xf32>
    %99 = arith.mulf %97, %98 : vector<8x256xf32>
    %100 = vector.extract_strided_slice %73 {offsets = [0, 144], sizes = [8, 256], strides = [1, 1]} : vector<8x512xf32> to vector<8x256xf32>
    %101 = vector.extract_strided_slice %73 {offsets = [0, 145], sizes = [8, 256], strides = [1, 1]} : vector<8x512xf32> to vector<8x256xf32>
    %102 = vector.broadcast %26 : vector<1x256xf32> to vector<8x256xf32>
    %103 = arith.mulf %101, %102 : vector<8x256xf32>
    %104 = tpu.concatenate %99, %100, %103 in 0 : vector<8x256xf32>, vector<8x256xf32>, vector<8x256xf32> -> vector<24x256xf32>
    %c2_37 = arith.constant 2 : index
    %c0_38 = arith.constant 0 : index
    %c0_39 = arith.constant 0 : index
    %105 = vector.load %arg4[%c2_37, %c0_38, %c0_39] : memref<3x8x24xf32, #tpu.memory_space<vmem>>, vector<1x8x24xf32>
    %106 = vector.shape_cast %105 : vector<1x8x24xf32> to vector<8x24xf32>
    %cst_40 = arith.constant dense<0.000000e+00> : vector<8x256xf32>
    %107 = tpu.matmul %106, %104, %cst_40 {dimension_numbers = #tpu.dot_dimension_numbers<[1], [0], [0], [1], [0, 0, 1, 1], [], []>} : vector<8x24xf32>, vector<24x256xf32>, vector<8x256xf32> -> vector<8x256xf32>
    %108 = arith.addf %96, %107 : vector<8x256xf32>
    %c0_41 = arith.constant 0 : index
    %c0_42 = arith.constant 0 : index
    %109 = vector.load %arg5[%c0_41, %c0_42] : memref<8x1xf32, #tpu.memory_space<vmem>>, vector<8x1xf32>
    %110 = vector.broadcast %109 : vector<8x1xf32> to vector<8x256xf32>
    %111 = arith.addf %108, %110 : vector<8x256xf32>
    %112 = arith.addf %111, %1 : vector<8x256xf32>
    %cst_43 = arith.constant 0.000000e+00 : f32
    %113 = vector.broadcast %cst_43 : f32 to vector<8x256xf32>
    %114 = arith.maximumf %112, %113 : vector<8x256xf32>
    %c0_44 = arith.constant 0 : index
    %c0_45 = arith.constant 0 : index
    %c0_46 = arith.constant 0 : index
    %115 = vector.load %arg6[%c0_44, %c0_45, %c0_46] : memref<1x8x256xf32, #tpu.memory_space<vmem>>, vector<1x8x256xf32>
    %116 = vector.shape_cast %115 : vector<1x8x256xf32> to vector<8x256xf32>
    %117 = vector.shape_cast %114 : vector<8x256xf32> to vector<1x8x256xf32>
    tpu.vector_store %arg6[%c0_44, %c0_45, %c0_46], %117 {strides = array<i32>} : memref<1x8x256xf32, #tpu.memory_space<vmem>>, vector<1x8x256xf32>,
    return
  }
  func.func @transform_0(%arg0: i32) -> (i32, i32, i32) {
    %c0_i32 = arith.constant 0 : i32
    %c0_i32_0 = arith.constant 0 : i32
    %c0_i32_1 = arith.constant 0 : i32
    return %arg0, %c0_i32, %c0_i32_0 : i32, i32, i32
  }
  func.func @transform_1(%arg0: i32) -> (i32, i32, i32) {
    %c0_i32 = arith.constant 0 : i32
    %c0_i32_0 = arith.constant 0 : i32
    %c0_i32_1 = arith.constant 0 : i32
    %c0_i32_2 = arith.constant 0 : i32
    return %c0_i32, %c0_i32_0, %c0_i32_1 : i32, i32, i32
  }
  func.func @transform_2(%arg0: i32) -> (i32, i32) {
    %c0_i32 = arith.constant 0 : i32
    %c0_i32_0 = arith.constant 0 : i32
    %c0_i32_1 = arith.constant 0 : i32
    return %c0_i32, %c0_i32_0 : i32, i32
  }
  func.func @transform_3(%arg0: i32) -> (i32, i32, i32) {
    %c0_i32 = arith.constant 0 : i32
    %c0_i32_0 = arith.constant 0 : i32
    %c0_i32_1 = arith.constant 0 : i32
    %c0_i32_2 = arith.constant 0 : i32
    return %c0_i32, %c0_i32_0, %c0_i32_1 : i32, i32, i32
  }
  func.func @transform_4(%arg0: i32) -> (i32, i32) {
    %c0_i32 = arith.constant 0 : i32
    %c0_i32_0 = arith.constant 0 : i32
    %c0_i32_1 = arith.constant 0 : i32
    return %c0_i32, %c0_i32_0 : i32, i32
  }
  func.func @transform_5(%arg0: i32) -> (i32, i32, i32) {
    %c0_i32 = arith.constant 0 : i32
    %c0_i32_0 = arith.constant 0 : i32
    %c0_i32_1 = arith.constant 0 : i32
    return %arg0, %c0_i32, %c0_i32_0 : i32, i32, i32
  }
}

</mosaic_0001>

<llo_original>
// kernel: tpu_custom_call.1
$region0: #{tpu_custom_call.1}
  #allocation0 [shape = 'u32[]', space=smem, size = 0x4, offset = 0x4, fixed_abs, tag = 'smem constant byte address 0x4 - core index']
  #allocation1 [shape = 'u32[72,128]{1,0:T(1,128)}', space=vmem, size = 0x9000, scoped, tag = 'internal scratch']
  #allocation2 [shape = 'f32[8,512]{1,0:T(8,128)}', space=vmem, size = 0x4000, scoped, tag = 'scratch operand']
  %s0 = inlined_call_operand.hbm [shape: f32[2,8,256], index: 0, kind: input, shape index: {}]
  %s1 = inlined_call_operand.hbm [shape: f32[3,8,24], index: 1, kind: input, shape index: {}]
  %s2 = inlined_call_operand.vmem [shape: f32[8,1], index: 2, kind: input, shape index: {}]
  %s3 = inlined_call_operand.hbm [shape: f32[3,8,24], index: 3, kind: input, shape index: {}]
  %s4 = inlined_call_operand.vmem [shape: f32[8,1], index: 4, kind: input, shape index: {}]
  %s5 = inlined_call_operand.hbm [shape: f32[2,8,256], index: 5, kind: output, shape index: {}]
  %s6 = sld [smem:[#allocation0]]
  $region65: #{tpu_custom_call.1} parent=0
    _
  %s8 = ssub.s32 1, %s6
  %s9 = scalar_select 0, %s8, %s6
  $region1: #{tpu_custom_call.1} parent=0
    #allocation3 [shape = 'u8[16384]{0}', space=vmem, size = 0x4000, scoped, tag = 'input window, operand 0']
    #allocation4 [shape = 's32[2]{0}', space=sflag, size = 0x8, scoped, tag = 'scoped memory for tpu_custom_call.1']
    #allocation5 [shape = 's32[2]{0}', space=sflag, size = 0x8, scoped, tag = 'scoped memory for tpu_custom_call.1']
    #allocation6 [shape = 'u8[12288]{0}', space=vmem, size = 0x3000, scoped, tag = 'input window, operand 1, single buffered']
    #allocation7 [shape = 's32[1]{0}', space=sflag, size = 0x4, scoped, tag = 'scoped memory for tpu_custom_call.1']
    #allocation8 [shape = 'u8[12288]{0}', space=vmem, size = 0x3000, scoped, tag = 'input window, operand 3, single buffered']
    #allocation9 [shape = 'u8[16384]{0}', space=vmem, size = 0x4000, scoped, tag = 'output window, operand 0']
    %10 = vsyncpa [#allocation4], 0
    %s11 = scalar_lea.sflag [#allocation4], 1
    %12 = vsyncpa %s11, 0
    %13 = vsyncpa [#allocation7], 0
    %14 = vsyncpa [#allocation5], 0
    %s15 = scalar_lea.sflag [#allocation5], 1
    %16 = vsyncpa %s15, 0
    loop: start=0, step=1, limit=4
    $region2: #{tpu_custom_call.1} parent=1 // loop_pre_header
      _
    $region3: #{tpu_custom_call.1} parent=1 // loop_header
      %s18 = sphi 0, %s22
      %p19 = scmp.ge.s32.totalorder %s18, 4
      %s28 = sphi 0, %s30
      %s31 = sphi 0, %s28
      %s32 = sphi 0, %s31
      %s48 = sphi 0, %s32
      %s52 = sphi 0, %s52
      %s54 = sphi 0, %s52
      %s55 = sphi 0, %s54
      %s69 = sphi 0, %s55
      %s73 = sphi 0, %s73
      %s75 = sphi 0, %s73
      %s76 = sphi 0, %s75
      %s90 = sphi 0, %s76
      %s94 = sphi 0, %s94
      %s96 = sphi 0, %s94
      %s97 = sphi 0, %s96
      %s111 = sphi 0, %s97
      %s115 = sphi 0, %s115
      %s117 = sphi 0, %s115
      %s118 = sphi 0, %s117
      %s132 = sphi 0, %s118
      %s138 = sphi 0, %s140
      %s141 = sphi 0, %s138
      %s142 = sphi 0, %s141
      %s158 = sphi 0, %s142
    $region4: #{tpu_custom_call.1} parent=1 // loop_header_branch
      %21 = sbr.rel (%p19) target = $region8
    $region5: #{tpu_custom_call.1} parent=1 // loop_body
      %s23 = ssub.s32 %s18, 1
      %s24 = ssub.s32 %s18, 2
      %s25 = sadd.s32 %s18, 1
      %s26 = ssub.s32 %s18, %s25
      %p27 = scmp.eq.s32.totalorder %s26, 0
      %s29 = sadd.s32 %s28, 1
      %s30 = scalar_select %p27, %s28, %s29
      %p33 = pneg %p27
      %p34 = scmp.eq.s32.totalorder %s18, 1
      %p35 = por %p33, %p34
      %p36 = scmp.ne.s32.totalorder %s28, %s31
      %p37 = scmp.eq.s32.totalorder %s18, 0
      %p38 = por %p36, %p37
      %p39 = scmp.ne.s32.totalorder %s28, %s31
      %p40 = scmp.eq.s32.totalorder %s23, 1
      %p41 = por %p39, %p40
      %p42 = scmp.ne.s32.totalorder %s31, %s32
      %p43 = scmp.eq.s32.totalorder %s23, 0
      %p44 = por %p42, %p43
      %p45 = scmp.ne.s32.totalorder %s31, %s32
      %p46 = scmp.eq.s32.totalorder %s24, 1
      %p47 = por %p45, %p46
      %p49 = scmp.ne.s32.totalorder %s32, %s48
      %p50 = scmp.eq.s32.totalorder %s24, 0
      %p51 = por %p49, %p50
      %s53 = sadd.s32 %s52, 1
      %p56 = scmp.eq.s32.totalorder %s18, 1
      %p57 = scmp.ne.s32.totalorder %s52, %s54
      %p58 = scmp.eq.s32.totalorder %s18, 0
      %p59 = por %p57, %p58
      %p60 = scmp.ne.s32.totalorder %s52, %s54
      %p61 = scmp.eq.s32.totalorder %s23, 1
      %p62 = por %p60, %p61
      %p63 = scmp.ne.s32.totalorder %s54, %s55
      %p64 = scmp.eq.s32.totalorder %s23, 0
      %p65 = por %p63, %p64
      %p66 = scmp.ne.s32.totalorder %s54, %s55
      %p67 = scmp.eq.s32.totalorder %s24, 1
      %p68 = por %p66, %p67
      %p70 = scmp.ne.s32.totalorder %s55, %s69
      %p71 = scmp.eq.s32.totalorder %s24, 0
      %p72 = por %p70, %p71
      %s74 = sadd.s32 %s73, 1
      %p77 = scmp.eq.s32.totalorder %s18, 1
      %p78 = scmp.ne.s32.totalorder %s73, %s75
      %p79 = scmp.eq.s32.totalorder %s18, 0
      %p80 = por %p78, %p79
      %p81 = scmp.ne.s32.totalorder %s73, %s75
      %p82 = scmp.eq.s32.totalorder %s23, 1
      %p83 = por %p81, %p82
      %p84 = scmp.ne.s32.totalorder %s75, %s76
      %p85 = scmp.eq.s32.totalorder %s23, 0
      %p86 = por %p84, %p85
      %p87 = scmp.ne.s32.totalorder %s75, %s76
      %p88 = scmp.eq.s32.totalorder %s24, 1
      %p89 = por %p87, %p88
      %p91 = scmp.ne.s32.totalorder %s76, %s90
      %p92 = scmp.eq.s32.totalorder %s24, 0
      %p93 = por %p91, %p92
      %s95 = sadd.s32 %s94, 1
      %p98 = scmp.eq.s32.totalorder %s18, 1
      %p99 = scmp.ne.s32.totalorder %s94, %s96
      %p100 = scmp.eq.s32.totalorder %s18, 0
      %p101 = por %p99, %p100
      %p102 = scmp.ne.s32.totalorder %s94, %s96
      %p103 = scmp.eq.s32.totalorder %s23, 1
      %p104 = por %p102, %p103
      %p105 = scmp.ne.s32.totalorder %s96, %s97
      %p106 = scmp.eq.s32.totalorder %s23, 0
      %p107 = por %p105, %p106
      %p108 = scmp.ne.s32.totalorder %s96, %s97
      %p109 = scmp.eq.s32.totalorder %s24, 1
      %p110 = por %p108, %p109
      %p112 = scmp.ne.s32.totalorder %s97, %s111
      %p113 = scmp.eq.s32.totalorder %s24, 0
      %p114 = por %p112, %p113
      %s116 = sadd.s32 %s115, 1
      %p119 = scmp.eq.s32.totalorder %s18, 1
      %p120 = scmp.ne.s32.totalorder %s115, %s117
      %p121 = scmp.eq.s32.totalorder %s18, 0
      %p122 = por %p120, %p121
      %p123 = scmp.ne.s32.totalorder %s115, %s117
      %p124 = scmp.eq.s32.totalorder %s23, 1
      %p125 = por %p123, %p124
      %p126 = scmp.ne.s32.totalorder %s117, %s118
      %p127 = scmp.eq.s32.totalorder %s23, 0
      %p128 = por %p126, %p127
      %p129 = scmp.ne.s32.totalorder %s117, %s118
      %p130 = scmp.eq.s32.totalorder %s24, 1
      %p131 = por %p129, %p130
      %p133 = scmp.ne.s32.totalorder %s118, %s132
      %p134 = scmp.eq.s32.totalorder %s24, 0
      %p135 = por %p133, %p134
      %s136 = ssub.s32 %s18, %s25
      %p137 = scmp.eq.s32.totalorder %s136, 0
      %s139 = sadd.s32 %s138, 1
      %s140 = scalar_select %p137, %s138, %s139
      %p143 = pneg %p137
      %p144 = scmp.eq.s32.totalorder %s18, 1
      %p145 = por %p143, %p144
      %p146 = scmp.ne.s32.totalorder %s138, %s141
      %p147 = scmp.eq.s32.totalorder %s18, 0
      %p148 = por %p146, %p147
      %p149 = scmp.ne.s32.totalorder %s138, %s141
      %p150 = scmp.eq.s32.totalorder %s23, 1
      %p151 = por %p149, %p150
      %p152 = scmp.ne.s32.totalorder %s141, %s142
      %p153 = scmp.eq.s32.totalorder %s23, 0
      %p154 = por %p152, %p153
      %p155 = scmp.ne.s32.totalorder %s141, %s142
      %p156 = scmp.eq.s32.totalorder %s24, 1
      %p157 = por %p155, %p156
      %p159 = scmp.ne.s32.totalorder %s142, %s158
      %p160 = scmp.eq.s32.totalorder %s24, 0
      %p161 = por %p159, %p160
      %p162 = scmp.le.s32.totalorder 1, %s18
      %p163 = scmp.lt.s32.totalorder %s18, 3
      %p164 = pnand %p162, %p163
      %p165 = pneg %p164
      // Predicated region
      $region9: #{tpu_custom_call.1} parent=5 // pred_check
        _
      $region10: #{tpu_custom_call.1} parent=5 // pred_check_branch
        %167 = sbr.rel (%p164) target = $region12
      $region11: #{tpu_custom_call.1} parent=5 // pred_region
        %s168 = ssub.s32 %s18, 1
        // Predicated region
        $region13: #{tpu_custom_call.1} parent=11 // pred_check
          %p169 = pneg %p65
        $region14: #{tpu_custom_call.1} parent=11 // pred_check_branch
          %171 = sbr.rel (%p169) target = $region16
        $region15: #{tpu_custom_call.1} parent=11 // pred_region
          %173 = vsyncadd [#allocation7], 0
          %s174 = sshll.u32 %s1, 4
          %s175 = int_to_ptr.hbm [resolvable:$true] %s174
          %s176 = sshll.u32 [#allocation6], 4
          %s177 = int_to_ptr.vmem [resolvable:$true] %s176
          %182 = dma.hbm_to_vmem [thread:$0]  %s175, 384, %s177, [#allocation7], 128, 128, 8
        $region16: #{tpu_custom_call.1} parent=11 // pred_fallthru
          _
        // Predicated region
        $region17: #{tpu_custom_call.1} parent=11 // pred_check
          %p183 = pneg %p86
        $region18: #{tpu_custom_call.1} parent=11 // pred_check_branch
          %185 = sbr.rel (%p183) target = $region20
        $region19: #{tpu_custom_call.1} parent=11 // pred_region
          _
        $region20: #{tpu_custom_call.1} parent=11 // pred_fallthru
          _
        // Predicated region
        $region21: #{tpu_custom_call.1} parent=11 // pred_check
          %p186 = pneg %p107
        $region22: #{tpu_custom_call.1} parent=11 // pred_check_branch
          %188 = sbr.rel (%p186) target = $region24
        $region23: #{tpu_custom_call.1} parent=11 // pred_region
          %190 = vsyncadd [#allocation7], 0
          %s191 = sshll.u32 %s3, 4
          %s192 = int_to_ptr.hbm [resolvable:$true] %s191
          %s193 = sshll.u32 [#allocation8], 4
          %s194 = int_to_ptr.vmem [resolvable:$true] %s193
          %199 = dma.hbm_to_vmem [thread:$0]  %s192, 384, %s194, [#allocation7], 128, 128, 8
        $region24: #{tpu_custom_call.1} parent=11 // pred_fallthru
          _
        // Predicated region
        $region25: #{tpu_custom_call.1} parent=11 // pred_check
          %p200 = pneg %p128
        $region26: #{tpu_custom_call.1} parent=11 // pred_check_branch
          %202 = sbr.rel (%p200) target = $region28
        $region27: #{tpu_custom_call.1} parent=11 // pred_region
          _
        $region28: #{tpu_custom_call.1} parent=11 // pred_fallthru
          _
      $region12: #{tpu_custom_call.1} parent=5 // pred_fallthru
        _
      %p203 = scmp.lt.s32.totalorder %s18, 2
      // Predicated region
      $region29: #{tpu_custom_call.1} parent=5 // pred_check
        %p204 = pneg %p203
      $region30: #{tpu_custom_call.1} parent=5 // pred_check_branch
        %206 = sbr.rel (%p204) target = $region32
      $region31: #{tpu_custom_call.1} parent=5 // pred_region
        // Predicated region
        $region33: #{tpu_custom_call.1} parent=31 // pred_check
          %p207 = pneg %p38
        $region34: #{tpu_custom_call.1} parent=31 // pred_check_branch
          %209 = sbr.rel (%p207) target = $region36
        $region35: #{tpu_custom_call.1} parent=31 // pred_region
          %s210 = sand.u32 %s28, 1
          %s211 = scalar_lea.sflag [#allocation4], %s210
          %s212 = sand.u32 %s28, 1
          %s213 = smul.addr %s212, 16
          %s214 = scalar_lea.vmem [#allocation3], %s213
          %216 = vsyncadd %s211, 0
          %s217 = smul.addr %s18, 2
          %s218 = smul.addr %s217, 8
          %s219 = scalar_lea.hbm %s0, %s218
          %s221 = sshll.u32 %s219, 4
          %s222 = int_to_ptr.hbm [resolvable:$true] %s221
          %s223 = sshll.u32 %s214, 4
          %s224 = int_to_ptr.vmem [resolvable:$true] %s223
          %226 = dma.hbm_to_vmem [thread:$0]  %s222, 256, %s224, %s211
        $region36: #{tpu_custom_call.1} parent=31 // pred_fallthru
          _
      $region32: #{tpu_custom_call.1} parent=5 // pred_fallthru
        _
      %p227 = scmp.le.s32.totalorder 1, %s18
      %p228 = scmp.lt.s32.totalorder %s18, 3
      %p229 = pnand %p227, %p228
      %p230 = pneg %p229
      // Predicated region
      $region37: #{tpu_custom_call.1} parent=5 // pred_check
        _
      $region38: #{tpu_custom_call.1} parent=5 // pred_check_branch
        %232 = sbr.rel (%p229) target = $region40
      $region39: #{tpu_custom_call.1} parent=5 // pred_region
        %s233 = ssub.s32 %s18, 1
        %s234 = sand.u32 %s31, 1
        %s235 = scalar_lea.sflag [#allocation4], %s234
        %s236 = sand.u32 %s31, 1
        %s237 = smul.addr %s236, 16
        %s238 = scalar_lea.vmem [#allocation3], %s237
        // Predicated region
        $region41: #{tpu_custom_call.1} parent=39 // pred_check
          %p239 = pneg %p44
        $region42: #{tpu_custom_call.1} parent=39 // pred_check_branch
          %241 = sbr.rel (%p239) target = $region44
        $region43: #{tpu_custom_call.1} parent=39 // pred_region
          %243 = dma.done %s235, 256
        $region44: #{tpu_custom_call.1} parent=39 // pred_fallthru
          _
        // Predicated region
        $region45: #{tpu_custom_call.1} parent=39 // pred_check
          %p244 = pneg %p65
        $region46: #{tpu_custom_call.1} parent=39 // pred_check_branch
          %246 = sbr.rel (%p244) target = $region48
        $region47: #{tpu_custom_call.1} parent=39 // pred_region
          %248 = dma.done [#allocation7], 384
        $region48: #{tpu_custom_call.1} parent=39 // pred_fallthru
          _
        // Predicated region
        $region49: #{tpu_custom_call.1} parent=39 // pred_check
          %p249 = pneg %p107
        $region50: #{tpu_custom_call.1} parent=39 // pred_check_branch
          %251 = sbr.rel (%p249) target = $region52
        $region51: #{tpu_custom_call.1} parent=39 // pred_region
          %253 = dma.done [#allocation7], 384
        $region52: #{tpu_custom_call.1} parent=39 // pred_fallthru
          _
        %s254 = sand.u32 %s31, 1
        %s255 = scalar_lea.sflag [#allocation4], %s254
        %s256 = sand.u32 %s31, 1
        %s257 = smul.addr %s256, 16
        %s258 = scalar_lea.vmem [#allocation3], %s257
        %p259 = pneg %p44
        %p260 = pneg %p41
        %p261 = pneg %p65
        %p262 = pneg %p62
        %p263 = pneg %p86
        %p264 = pneg %p83
        %p265 = pneg %p107
        %p266 = pneg %p104
        %p267 = pneg %p128
        %p268 = pneg %p125
        %p269 = pneg %p154
        %p270 = pneg %p151
        %s271 = sand.u32 %s141, 1
        %s272 = scalar_lea.sflag [#allocation5], %s271
        %s273 = sand.u32 %s141, 1
        %s274 = smul.addr %s273, 16
        %s275 = scalar_lea.vmem [#allocation9], %s274
        %v276 = vld [vmem:[%s238] sm:$0xff]
        %v277 = vld [vmem:[%s238 + $0x8] sm:$0xff]
        %v278 = vlaneseq
        %v279 = vand.u32 %v278, 127
        %v280 = vadd.s32 %v279, 128
        %vm281 = vcmp.lt.s32.totalorder %v279, 0
        %v282 = vsub.s32 0, %v279
        %v283 = vsel %vm281, %v282, %v279
        %v284 = vshrl.u32 %v283, 4
        %v285 = vand.u32 %v283, 15
        %v286 = vsub.s32 0, %v285
        %v287 = vsel %vm281, %v286, %v285
        %vm288 = vcmp.lt.s32.totalorder %v280, 0
        %v289 = vsub.s32 0, %v280
        %v290 = vsel %vm288, %v289, %v280
        %v291 = vshrl.u32 %v290, 4
        %v292 = vand.u32 %v290, 15
        %v293 = vsub.s32 0, %v292
        %v294 = vsel %vm288, %v293, %v292
        %vm295 = vcmp.ne.s32.totalorder %v287, 0
        %vm296 = vcmp.ne.s32.totalorder %v294, 0
        %vm297 = vcmp.lt.s32.totalorder %v287, 0
        %vm298 = vcmp.lt.s32.totalorder %v294, 0
        %vm299 = vmand %vm297, %vm295
        %vm300 = vmand %vm298, %vm296
        %v301 = vadd.s32 %v287, 16
        %v302 = vadd.s32 %v294, 16
        %v303 = vsel %vm299, %v301, %v287
        %v304 = vsel %vm300, %v302, %v294
        %vm305 = vcmp.ne.s32.totalorder %v303, 0
        %vm306 = vcmp.ne.s32.totalorder %v304, 0
        %v307 = vsel %vm305, 1, 0
        %v308 = vsel %vm306, 1, 0
        %v309 = vcvt.s32.f32 %v307
        %v310 = vcvt.s32.f32 %v308
        %vm311 = vcmp.ne.s32.totalorder %v303, 15
        %vm312 = vcmp.ne.s32.totalorder %v304, 15
        %v313 = vsel %vm311, 1, 0
        %v314 = vsel %vm312, 1, 0
        %v315 = vcvt.s32.f32 %v313
        %v316 = vcvt.s32.f32 %v314
        %317 = vst [vmem:[#allocation2] sm:$0xff] 0.0
        %318 = vst [vmem:[#allocation2 + $0x18] sm:$0xff] 0.0
        %319 = vst [vmem:[#allocation2 + $0x8] sm:$0xff] %v276
        %320 = vst [vmem:[#allocation2 + $0x10] sm:$0xff] %v277
        %v321 = vld [vmem:[#allocation2] sm:$0xff]
        %v322 = vld [vmem:[#allocation2 + $0x8] sm:$0xff]
        %v323 = vld [vmem:[#allocation2 + $0x10] sm:$0xff]
        %v324 = vld [vmem:[#allocation2 + $0x18] sm:$0xff]
        %327 = vrot.lane.b32.xlu0 %v309, 111
        %v328 = vpop.permute.xlu0 %327
        %329 = vrot.lane.b32.xlu0 %v310, 111
        %v330 = vpop.permute.xlu0 %329
        %vm331 = vcmask 908288
        %v332 = vsel %vm331, %v328, %v330
        %v336 = vmul.f32 %v321, %v328
        %v337 = vmul.f32 %v322, %v332
        %v338 = vmul.f32 %v323, %v330
        %341 = vrot.lane.b32.xlu0 %v315, 113
        %v342 = vpop.permute.xlu0 %341
        %343 = vrot.lane.b32.xlu0 %v316, 113
        %v344 = vpop.permute.xlu0 %343
        %vm345 = vcmask 924672
        %v346 = vsel %vm345, %v342, %v344
        %v350 = vmul.f32 %v321, %v342
        %v351 = vmul.f32 %v322, %v346
        %v352 = vmul.f32 %v323, %v344
        %356 = vrot.lane.b32.xlu0 %v321, 127
        %v357 = vpop.permute.xlu0 %356
        %358 = vrot.lane.b32.xlu0 %v322, 127
        %v359 = vpop.permute.xlu0 %358
        %360 = vrot.lane.b32.xlu0 %v323, 127
        %v361 = vpop.permute.xlu0 %360
        %vm362 = vcmask 1039360
        %v363 = vsel %vm362, %v357, %v359
        %v364 = vsel %vm362, %v359, %v361
        %368 = vrot.lane.b32.xlu0 %v350, 126
        %v369 = vpop.permute.xlu0 %368
        %370 = vrot.lane.b32.xlu0 %v351, 126
        %v371 = vpop.permute.xlu0 %370
        %372 = vrot.lane.b32.xlu0 %v352, 126
        %v373 = vpop.permute.xlu0 %372
        %vm374 = vcmask 1031168
        %v375 = vsel %vm374, %v369, %v371
        %v376 = vsel %vm374, %v371, %v373
        %v377 = vld [vmem:[#allocation6] sm:$0xff]
        %378 = vrot.lane.b32.xlu0 %v309, 127
        %v379 = vpop.permute.xlu0 %378
        %380 = vrot.lane.b32.xlu0 %v310, 127
        %v381 = vpop.permute.xlu0 %380
        %v382 = vsel %vm362, %v379, %v381
        %v386 = vmul.f32 %v321, %v379
        %v387 = vmul.f32 %v322, %v382
        %v388 = vmul.f32 %v323, %v381
        %389 = vrot.lane.b32.xlu0 %v315, 1
        %v390 = vpop.permute.xlu0 %389
        %391 = vrot.lane.b32.xlu0 %v316, 1
        %v392 = vpop.permute.xlu0 %391
        %vm393 = vcmask 7168
        %v394 = vsel %vm393, %v390, %v392
        %v398 = vmul.f32 %v322, %v390
        %v399 = vmul.f32 %v323, %v394
        %v400 = vmul.f32 %v324, %v392
        %404 = vrot.lane.b32.xlu0 %v398, 126
        %v405 = vpop.permute.xlu0 %404
        %406 = vrot.lane.b32.xlu0 %v399, 126
        %v407 = vpop.permute.xlu0 %406
        %408 = vrot.lane.b32.xlu0 %v400, 126
        %v409 = vpop.permute.xlu0 %408
        %v410 = vsel %vm374, %v405, %v407
        %v411 = vsel %vm374, %v407, %v409
        %s412 = scalar_lea.vmem [#allocation6], 8
        %v413 = vld [vmem:[%s412] sm:$0xff]
        %417 = vrot.lane.b32.xlu0 %v386, 1
        %v418 = vpop.permute.xlu0 %417
        %419 = vrot.lane.b32.xlu0 %v387, 1
        %v420 = vpop.permute.xlu0 %419
        %421 = vrot.lane.b32.xlu0 %v388, 1
        %v422 = vpop.permute.xlu0 %421
        %423 = vrot.lane.b32.xlu0 %v359, 1
        %v424 = vpop.permute.xlu0 %423
        %425 = vrot.lane.b32.xlu0 %v364, 1
        %v426 = vpop.permute.xlu0 %425
        %427 = vrot.lane.b32.xlu0 %v361, 1
        %v428 = vpop.permute.xlu0 %427
        %429 = vrot.lane.b32.xlu0 %v405, 1
        %v430 = vpop.permute.xlu0 %429
        %431 = vrot.lane.b32.xlu0 %v410, 1
        %v432 = vpop.permute.xlu0 %431
        %433 = vrot.lane.b32.xlu0 %v411, 1
        %v434 = vpop.permute.xlu0 %433
        %v435 = vsel %vm393, %v418, %v420
        %v436 = vsel %vm393, %v420, %v422
        %v437 = vsel %vm393, %v424, %v426
        %v438 = vsel %vm393, %v426, %v428
        %v439 = vsel %vm393, %v430, %v432
        %v440 = vsel %vm393, %v432, %v434
        %vm447 = vcmask 195584
        %v449 = vsel %vm447, %v413, 0
        %451 = vmatpush.msra.mxu0 0.0
        %452 = vmatpush.msra.mxu0 0.0
        %453 = vmatpush.msra.mxu0 0.0
        %454 = vmatpush.msra.mxu0 0.0
        %455 = vmatpush.msra.mxu0 0.0
        %456 = vmatpush.msra.mxu0 0.0
        %457 = vmatpush.msra.mxu0 0.0
        %458 = vmatpush.msra.mxu0 0.0
        %459 = vmatpush.msra.mxu0 0.0
        %460 = vmatpush.msra.mxu0 0.0
        %461 = vmatpush.msra.mxu0 0.0
        %462 = vmatpush.msra.mxu0 0.0
        %463 = vmatpush.msra.mxu0 0.0
        %464 = vmatpush.msra.mxu0 %v439
        %465 = vmatpush.msra.mxu0 %v437
        %466 = vmatpush.msra.mxu0 %v435
        %467 = vmatmul.f32.gmra.mxu0 %v449
        %v468 = vpop.f32.mrf.mxu0
        %v469 = vadd.f32 0.0, %v468
        %470 = vdwg.mxu0
        %471 = vmatpush.msra.mxu0 0.0
        %472 = vmatpush.msra.mxu0 0.0
        %473 = vmatpush.msra.mxu0 0.0
        %474 = vmatpush.msra.mxu0 0.0
        %475 = vmatpush.msra.mxu0 0.0
        %476 = vmatpush.msra.mxu0 0.0
        %477 = vmatpush.msra.mxu0 0.0
        %478 = vmatpush.msra.mxu0 0.0
        %479 = vmatpush.msra.mxu0 0.0
        %480 = vmatpush.msra.mxu0 0.0
        %481 = vmatpush.msra.mxu0 0.0
        %482 = vmatpush.msra.mxu0 0.0
        %483 = vmatpush.msra.mxu0 0.0
        %484 = vmatpush.msra.mxu0 %v440
        %485 = vmatpush.msra.mxu0 %v438
        %486 = vmatpush.msra.mxu0 %v436
        %487 = vmatmul.f32.gmra.mxu0 %v449
        %v488 = vpop.f32.mrf.mxu0
        %v489 = vadd.f32 0.0, %v488
        %490 = vdwg.mxu0
        %494 = vrot.lane.b32.xlu0 %v336, 17
        %v495 = vpop.permute.xlu0 %494
        %496 = vrot.lane.b32.xlu0 %v337, 17
        %v497 = vpop.permute.xlu0 %496
        %498 = vrot.lane.b32.xlu0 %v338, 17
        %v499 = vpop.permute.xlu0 %498
        %500 = vrot.lane.b32.xlu0 %v363, 17
        %v501 = vpop.permute.xlu0 %500
        %502 = vrot.lane.b32.xlu0 %v364, 17
        %v503 = vpop.permute.xlu0 %502
        %504 = vrot.lane.b32.xlu0 %v361, 17
        %v505 = vpop.permute.xlu0 %504
        %506 = vrot.lane.b32.xlu0 %v375, 17
        %v507 = vpop.permute.xlu0 %506
        %508 = vrot.lane.b32.xlu0 %v376, 17
        %v509 = vpop.permute.xlu0 %508
        %510 = vrot.lane.b32.xlu0 %v373, 17
        %v511 = vpop.permute.xlu0 %510
        %vm512 = vcmask 138240
        %v513 = vsel %vm512, %v495, %v497
        %v514 = vsel %vm512, %v497, %v499
        %v515 = vsel %vm512, %v501, %v503
        %v516 = vsel %vm512, %v503, %v505
        %v517 = vsel %vm512, %v507, %v509
        %v518 = vsel %vm512, %v509, %v511
        %v526 = vsel %vm447, %v377, 0
        %528 = vmatpush.msra.mxu0 0.0
        %529 = vmatpush.msra.mxu0 0.0
        %530 = vmatpush.msra.mxu0 0.0
        %531 = vmatpush.msra.mxu0 0.0
        %532 = vmatpush.msra.mxu0 0.0
        %533 = vmatpush.msra.mxu0 0.0
        %534 = vmatpush.msra.mxu0 0.0
        %535 = vmatpush.msra.mxu0 0.0
        %536 = vmatpush.msra.mxu0 0.0
        %537 = vmatpush.msra.mxu0 0.0
        %538 = vmatpush.msra.mxu0 0.0
        %539 = vmatpush.msra.mxu0 0.0
        %540 = vmatpush.msra.mxu0 0.0
        %541 = vmatpush.msra.mxu0 %v517
        %542 = vmatpush.msra.mxu0 %v515
        %543 = vmatpush.msra.mxu0 %v513
        %544 = vmatmul.f32.gmra.mxu0 %v526
        %v545 = vpop.f32.mrf.mxu0
        %v546 = vadd.f32 %v469, %v545
        %547 = vdwg.mxu0
        %548 = vmatpush.msra.mxu0 0.0
        %549 = vmatpush.msra.mxu0 0.0
        %550 = vmatpush.msra.mxu0 0.0
        %551 = vmatpush.msra.mxu0 0.0
        %552 = vmatpush.msra.mxu0 0.0
        %553 = vmatpush.msra.mxu0 0.0
        %554 = vmatpush.msra.mxu0 0.0
        %555 = vmatpush.msra.mxu0 0.0
        %556 = vmatpush.msra.mxu0 0.0
        %557 = vmatpush.msra.mxu0 0.0
        %558 = vmatpush.msra.mxu0 0.0
        %559 = vmatpush.msra.mxu0 0.0
        %560 = vmatpush.msra.mxu0 0.0
        %561 = vmatpush.msra.mxu0 %v518
        %562 = vmatpush.msra.mxu0 %v516
        %563 = vmatpush.msra.mxu0 %v514
        %564 = vmatmul.f32.gmra.mxu0 %v526
        %v565 = vpop.f32.mrf.mxu0
        %v566 = vadd.f32 %v489, %v565
        %567 = vdwg.mxu0
        %568 = vrot.lane.b32.xlu0 %v309, 15
        %v569 = vpop.permute.xlu0 %568
        %570 = vrot.lane.b32.xlu0 %v310, 15
        %v571 = vpop.permute.xlu0 %570
        %vm572 = vcmask 121856
        %v573 = vsel %vm572, %v569, %v571
        %v577 = vmul.f32 %v322, %v569
        %v578 = vmul.f32 %v323, %v573
        %v579 = vmul.f32 %v324, %v571
        %580 = vrot.lane.b32.xlu0 %v315, 17
        %v581 = vpop.permute.xlu0 %580
        %582 = vrot.lane.b32.xlu0 %v316, 17
        %v583 = vpop.permute.xlu0 %582
        %v584 = vsel %vm512, %v581, %v583
        %v588 = vmul.f32 %v322, %v581
        %v589 = vmul.f32 %v323, %v584
        %v590 = vmul.f32 %v324, %v583
        %592 = vrot.lane.b32.xlu0 %v324, 127
        %v593 = vpop.permute.xlu0 %592
        %v594 = vsel %vm362, %v361, %v593
        %598 = vrot.lane.b32.xlu0 %v588, 126
        %v599 = vpop.permute.xlu0 %598
        %600 = vrot.lane.b32.xlu0 %v589, 126
        %v601 = vpop.permute.xlu0 %600
        %602 = vrot.lane.b32.xlu0 %v590, 126
        %v603 = vpop.permute.xlu0 %602
        %v604 = vsel %vm374, %v599, %v601
        %v605 = vsel %vm374, %v601, %v603
        %s606 = scalar_lea.vmem [#allocation6], 16
        %v607 = vld [vmem:[%s606] sm:$0xff]
        %611 = vrot.lane.b32.xlu0 %v577, 113
        %v612 = vpop.permute.xlu0 %611
        %613 = vrot.lane.b32.xlu0 %v578, 113
        %v614 = vpop.permute.xlu0 %613
        %615 = vrot.lane.b32.xlu0 %v579, 113
        %v616 = vpop.permute.xlu0 %615
        %617 = vrot.lane.b32.xlu0 %v364, 113
        %v618 = vpop.permute.xlu0 %617
        %619 = vrot.lane.b32.xlu0 %v594, 113
        %v620 = vpop.permute.xlu0 %619
        %621 = vrot.lane.b32.xlu0 %v593, 113
        %v622 = vpop.permute.xlu0 %621
        %623 = vrot.lane.b32.xlu0 %v604, 113
        %v624 = vpop.permute.xlu0 %623
        %625 = vrot.lane.b32.xlu0 %v605, 113
        %v626 = vpop.permute.xlu0 %625
        %627 = vrot.lane.b32.xlu0 %v603, 113
        %v628 = vpop.permute.xlu0 %627
        %v629 = vsel %vm345, %v612, %v614
        %v630 = vsel %vm345, %v614, %v616
        %v631 = vsel %vm345, %v618, %v620
        %v632 = vsel %vm345, %v620, %v622
        %v633 = vsel %vm345, %v624, %v626
        %v634 = vsel %vm345, %v626, %v628
        %v642 = vsel %vm447, %v607, 0
        %644 = vmatpush.msra.mxu0 0.0
        %645 = vmatpush.msra.mxu0 0.0
        %646 = vmatpush.msra.mxu0 0.0
        %647 = vmatpush.msra.mxu0 0.0
        %648 = vmatpush.msra.mxu0 0.0
        %649 = vmatpush.msra.mxu0 0.0
        %650 = vmatpush.msra.mxu0 0.0
        %651 = vmatpush.msra.mxu0 0.0
        %652 = vmatpush.msra.mxu0 0.0
        %653 = vmatpush.msra.mxu0 0.0
        %654 = vmatpush.msra.mxu0 0.0
        %655 = vmatpush.msra.mxu0 0.0
        %656 = vmatpush.msra.mxu0 0.0
        %657 = vmatpush.msra.mxu0 %v633
        %658 = vmatpush.msra.mxu0 %v631
        %659 = vmatpush.msra.mxu0 %v629
        %660 = vmatmul.f32.gmra.mxu0 %v642
        %v661 = vpop.f32.mrf.mxu0
        %v662 = vadd.f32 0.0, %v661
        %663 = vdwg.mxu0
        %664 = vmatpush.msra.mxu0 0.0
        %665 = vmatpush.msra.mxu0 0.0
        %666 = vmatpush.msra.mxu0 0.0
        %667 = vmatpush.msra.mxu0 0.0
        %668 = vmatpush.msra.mxu0 0.0
        %669 = vmatpush.msra.mxu0 0.0
        %670 = vmatpush.msra.mxu0 0.0
        %671 = vmatpush.msra.mxu0 0.0
        %672 = vmatpush.msra.mxu0 0.0
        %673 = vmatpush.msra.mxu0 0.0
        %674 = vmatpush.msra.mxu0 0.0
        %675 = vmatpush.msra.mxu0 0.0
        %676 = vmatpush.msra.mxu0 0.0
        %677 = vmatpush.msra.mxu0 %v634
        %678 = vmatpush.msra.mxu0 %v632
        %679 = vmatpush.msra.mxu0 %v630
        %680 = vmatmul.f32.gmra.mxu0 %v642
        %v681 = vpop.f32.mrf.mxu0
        %v682 = vadd.f32 0.0, %v681
        %683 = vdwg.mxu0
        %v684 = vadd.f32 %v546, %v662
        %v685 = vadd.f32 %v566, %v682
        %v686 = vld [vmem:[%s2] sm:$0xff]
        %688 = vset.pattern.permute.xlu0 0
        %689 = vperm.xlu0 %688, %v686
        %v690 = vpop.permute.xlu0 %689
        %v692 = vadd.f32 %v684, %v690
        %v693 = vadd.f32 %v685, %v690
        %v694 = vmax.f32 %v692, 0.0
        %v695 = vmax.f32 %v693, 0.0
        %696 = vst [vmem:[#allocation2 + $0x8] sm:$0xff] %v694
        %697 = vst [vmem:[#allocation2 + $0x10] sm:$0xff] %v695
        %v698 = vld [vmem:[#allocation2] sm:$0xff]
        %v699 = vld [vmem:[#allocation2 + $0x8] sm:$0xff]
        %v700 = vld [vmem:[#allocation2 + $0x10] sm:$0xff]
        %v701 = vld [vmem:[#allocation2 + $0x18] sm:$0xff]
        %v702 = vmul.f32 %v698, %v328
        %v703 = vmul.f32 %v699, %v332
        %v704 = vmul.f32 %v700, %v330
        %v705 = vmul.f32 %v698, %v342
        %v706 = vmul.f32 %v699, %v346
        %v707 = vmul.f32 %v700, %v344
        %711 = vrot.lane.b32.xlu0 %v698, 127
        %v712 = vpop.permute.xlu0 %711
        %713 = vrot.lane.b32.xlu0 %v699, 127
        %v714 = vpop.permute.xlu0 %713
        %715 = vrot.lane.b32.xlu0 %v700, 127
        %v716 = vpop.permute.xlu0 %715
        %v717 = vsel %vm362, %v712, %v714
        %v718 = vsel %vm362, %v714, %v716
        %722 = vrot.lane.b32.xlu0 %v705, 126
        %v723 = vpop.permute.xlu0 %722
        %724 = vrot.lane.b32.xlu0 %v706, 126
        %v725 = vpop.permute.xlu0 %724
        %726 = vrot.lane.b32.xlu0 %v707, 126
        %v727 = vpop.permute.xlu0 %726
        %v728 = vsel %vm374, %v723, %v725
        %v729 = vsel %vm374, %v725, %v727
        %v730 = vld [vmem:[#allocation8] sm:$0xff]
        %v731 = vmul.f32 %v698, %v379
        %v732 = vmul.f32 %v699, %v382
        %v733 = vmul.f32 %v700, %v381
        %v734 = vmul.f32 %v699, %v390
        %v735 = vmul.f32 %v700, %v394
        %v736 = vmul.f32 %v701, %v392
        %740 = vrot.lane.b32.xlu0 %v734, 126
        %v741 = vpop.permute.xlu0 %740
        %742 = vrot.lane.b32.xlu0 %v735, 126
        %v743 = vpop.permute.xlu0 %742
        %744 = vrot.lane.b32.xlu0 %v736, 126
        %v745 = vpop.permute.xlu0 %744
        %v746 = vsel %vm374, %v741, %v743
        %v747 = vsel %vm374, %v743, %v745
        %s748 = scalar_lea.vmem [#allocation8], 8
        %v749 = vld [vmem:[%s748] sm:$0xff]
        %753 = vrot.lane.b32.xlu0 %v731, 1
        %v754 = vpop.permute.xlu0 %753
        %755 = vrot.lane.b32.xlu0 %v732, 1
        %v756 = vpop.permute.xlu0 %755
        %757 = vrot.lane.b32.xlu0 %v733, 1
        %v758 = vpop.permute.xlu0 %757
        %759 = vrot.lane.b32.xlu0 %v714, 1
        %v760 = vpop.permute.xlu0 %759
        %761 = vrot.lane.b32.xlu0 %v718, 1
        %v762 = vpop.permute.xlu0 %761
        %763 = vrot.lane.b32.xlu0 %v716, 1
        %v764 = vpop.permute.xlu0 %763
        %765 = vrot.lane.b32.xlu0 %v741, 1
        %v766 = vpop.permute.xlu0 %765
        %767 = vrot.lane.b32.xlu0 %v746, 1
        %v768 = vpop.permute.xlu0 %767
        %769 = vrot.lane.b32.xlu0 %v747, 1
        %v770 = vpop.permute.xlu0 %769
        %v771 = vsel %vm393, %v754, %v756
        %v772 = vsel %vm393, %v756, %v758
        %v773 = vsel %vm393, %v760, %v762
        %v774 = vsel %vm393, %v762, %v764
        %v775 = vsel %vm393, %v766, %v768
        %v776 = vsel %vm393, %v768, %v770
        %v784 = vsel %vm447, %v749, 0
        %786 = vmatpush.msra.mxu0 0.0
        %787 = vmatpush.msra.mxu0 0.0
        %788 = vmatpush.msra.mxu0 0.0
        %789 = vmatpush.msra.mxu0 0.0
        %790 = vmatpush.msra.mxu0 0.0
        %791 = vmatpush.msra.mxu0 0.0
        %792 = vmatpush.msra.mxu0 0.0
        %793 = vmatpush.msra.mxu0 0.0
        %794 = vmatpush.msra.mxu0 0.0
        %795 = vmatpush.msra.mxu0 0.0
        %796 = vmatpush.msra.mxu0 0.0
        %797 = vmatpush.msra.mxu0 0.0
        %798 = vmatpush.msra.mxu0 0.0
        %799 = vmatpush.msra.mxu0 %v775
        %800 = vmatpush.msra.mxu0 %v773
        %801 = vmatpush.msra.mxu0 %v771
        %802 = vmatmul.f32.gmra.mxu0 %v784
        %v803 = vpop.f32.mrf.mxu0
        %v804 = vadd.f32 0.0, %v803
        %805 = vdwg.mxu0
        %806 = vmatpush.msra.mxu0 0.0
        %807 = vmatpush.msra.mxu0 0.0
        %808 = vmatpush.msra.mxu0 0.0
        %809 = vmatpush.msra.mxu0 0.0
        %810 = vmatpush.msra.mxu0 0.0
        %811 = vmatpush.msra.mxu0 0.0
        %812 = vmatpush.msra.mxu0 0.0
        %813 = vmatpush.msra.mxu0 0.0
        %814 = vmatpush.msra.mxu0 0.0
        %815 = vmatpush.msra.mxu0 0.0
        %816 = vmatpush.msra.mxu0 0.0
        %817 = vmatpush.msra.mxu0 0.0
        %818 = vmatpush.msra.mxu0 0.0
        %819 = vmatpush.msra.mxu0 %v776
        %820 = vmatpush.msra.mxu0 %v774
        %821 = vmatpush.msra.mxu0 %v772
        %822 = vmatmul.f32.gmra.mxu0 %v784
        %v823 = vpop.f32.mrf.mxu0
        %v824 = vadd.f32 0.0, %v823
        %825 = vdwg.mxu0
        %829 = vrot.lane.b32.xlu0 %v702, 17
        %v830 = vpop.permute.xlu0 %829
        %831 = vrot.lane.b32.xlu0 %v703, 17
        %v832 = vpop.permute.xlu0 %831
        %833 = vrot.lane.b32.xlu0 %v704, 17
        %v834 = vpop.permute.xlu0 %833
        %835 = vrot.lane.b32.xlu0 %v717, 17
        %v836 = vpop.permute.xlu0 %835
        %837 = vrot.lane.b32.xlu0 %v718, 17
        %v838 = vpop.permute.xlu0 %837
        %839 = vrot.lane.b32.xlu0 %v716, 17
        %v840 = vpop.permute.xlu0 %839
        %841 = vrot.lane.b32.xlu0 %v728, 17
        %v842 = vpop.permute.xlu0 %841
        %843 = vrot.lane.b32.xlu0 %v729, 17
        %v844 = vpop.permute.xlu0 %843
        %845 = vrot.lane.b32.xlu0 %v727, 17
        %v846 = vpop.permute.xlu0 %845
        %v847 = vsel %vm512, %v830, %v832
        %v848 = vsel %vm512, %v832, %v834
        %v849 = vsel %vm512, %v836, %v838
        %v850 = vsel %vm512, %v838, %v840
        %v851 = vsel %vm512, %v842, %v844
        %v852 = vsel %vm512, %v844, %v846
        %v860 = vsel %vm447, %v730, 0
        %862 = vmatpush.msra.mxu0 0.0
        %863 = vmatpush.msra.mxu0 0.0
        %864 = vmatpush.msra.mxu0 0.0
        %865 = vmatpush.msra.mxu0 0.0
        %866 = vmatpush.msra.mxu0 0.0
        %867 = vmatpush.msra.mxu0 0.0
        %868 = vmatpush.msra.mxu0 0.0
        %869 = vmatpush.msra.mxu0 0.0
        %870 = vmatpush.msra.mxu0 0.0
        %871 = vmatpush.msra.mxu0 0.0
        %872 = vmatpush.msra.mxu0 0.0
        %873 = vmatpush.msra.mxu0 0.0
        %874 = vmatpush.msra.mxu0 0.0
        %875 = vmatpush.msra.mxu0 %v851
        %876 = vmatpush.msra.mxu0 %v849
        %877 = vmatpush.msra.mxu0 %v847
        %878 = vmatmul.f32.gmra.mxu0 %v860
        %v879 = vpop.f32.mrf.mxu0
        %v880 = vadd.f32 %v804, %v879
        %881 = vdwg.mxu0
        %882 = vmatpush.msra.mxu0 0.0
        %883 = vmatpush.msra.mxu0 0.0
        %884 = vmatpush.msra.mxu0 0.0
        %885 = vmatpush.msra.mxu0 0.0
        %886 = vmatpush.msra.mxu0 0.0
        %887 = vmatpush.msra.mxu0 0.0
        %888 = vmatpush.msra.mxu0 0.0
        %889 = vmatpush.msra.mxu0 0.0
        %890 = vmatpush.msra.mxu0 0.0
        %891 = vmatpush.msra.mxu0 0.0
        %892 = vmatpush.msra.mxu0 0.0
        %893 = vmatpush.msra.mxu0 0.0
        %894 = vmatpush.msra.mxu0 0.0
        %895 = vmatpush.msra.mxu0 %v852
        %896 = vmatpush.msra.mxu0 %v850
        %897 = vmatpush.msra.mxu0 %v848
        %898 = vmatmul.f32.gmra.mxu0 %v860
        %v899 = vpop.f32.mrf.mxu0
        %v900 = vadd.f32 %v824, %v899
        %901 = vdwg.mxu0
        %v902 = vmul.f32 %v699, %v569
        %v903 = vmul.f32 %v700, %v573
        %v904 = vmul.f32 %v701, %v571
        %v905 = vmul.f32 %v699, %v581
        %v906 = vmul.f32 %v700, %v584
        %v907 = vmul.f32 %v701, %v583
        %909 = vrot.lane.b32.xlu0 %v701, 127
        %v910 = vpop.permute.xlu0 %909
        %v911 = vsel %vm362, %v716, %v910
        %915 = vrot.lane.b32.xlu0 %v905, 126
        %v916 = vpop.permute.xlu0 %915
        %917 = vrot.lane.b32.xlu0 %v906, 126
        %v918 = vpop.permute.xlu0 %917
        %919 = vrot.lane.b32.xlu0 %v907, 126
        %v920 = vpop.permute.xlu0 %919
        %v921 = vsel %vm374, %v916, %v918
        %v922 = vsel %vm374, %v918, %v920
        %s923 = scalar_lea.vmem [#allocation8], 16
        %v924 = vld [vmem:[%s923] sm:$0xff]
        %928 = vrot.lane.b32.xlu0 %v902, 113
        %v929 = vpop.permute.xlu0 %928
        %930 = vrot.lane.b32.xlu0 %v903, 113
        %v931 = vpop.permute.xlu0 %930
        %932 = vrot.lane.b32.xlu0 %v904, 113
        %v933 = vpop.permute.xlu0 %932
        %934 = vrot.lane.b32.xlu0 %v718, 113
        %v935 = vpop.permute.xlu0 %934
        %936 = vrot.lane.b32.xlu0 %v911, 113
        %v937 = vpop.permute.xlu0 %936
        %938 = vrot.lane.b32.xlu0 %v910, 113
        %v939 = vpop.permute.xlu0 %938
        %940 = vrot.lane.b32.xlu0 %v921, 113
        %v941 = vpop.permute.xlu0 %940
        %942 = vrot.lane.b32.xlu0 %v922, 113
        %v943 = vpop.permute.xlu0 %942
        %944 = vrot.lane.b32.xlu0 %v920, 113
        %v945 = vpop.permute.xlu0 %944
        %v946 = vsel %vm345, %v929, %v931
        %v947 = vsel %vm345, %v931, %v933
        %v948 = vsel %vm345, %v935, %v937
        %v949 = vsel %vm345, %v937, %v939
        %v950 = vsel %vm345, %v941, %v943
        %v951 = vsel %vm345, %v943, %v945
        %v959 = vsel %vm447, %v924, 0
        %961 = vmatpush.msra.mxu0 0.0
        %962 = vmatpush.msra.mxu0 0.0
        %963 = vmatpush.msra.mxu0 0.0
        %964 = vmatpush.msra.mxu0 0.0
        %965 = vmatpush.msra.mxu0 0.0
        %966 = vmatpush.msra.mxu0 0.0
        %967 = vmatpush.msra.mxu0 0.0
        %968 = vmatpush.msra.mxu0 0.0
        %969 = vmatpush.msra.mxu0 0.0
        %970 = vmatpush.msra.mxu0 0.0
        %971 = vmatpush.msra.mxu0 0.0
        %972 = vmatpush.msra.mxu0 0.0
        %973 = vmatpush.msra.mxu0 0.0
        %974 = vmatpush.msra.mxu0 %v950
        %975 = vmatpush.msra.mxu0 %v948
        %976 = vmatpush.msra.mxu0 %v946
        %977 = vmatmul.f32.gmra.mxu0 %v959
        %v978 = vpop.f32.mrf.mxu0
        %v979 = vadd.f32 0.0, %v978
        %980 = vdwg.mxu0
        %981 = vmatpush.msra.mxu0 0.0
        %982 = vmatpush.msra.mxu0 0.0
        %983 = vmatpush.msra.mxu0 0.0
        %984 = vmatpush.msra.mxu0 0.0
        %985 = vmatpush.msra.mxu0 0.0
        %986 = vmatpush.msra.mxu0 0.0
        %987 = vmatpush.msra.mxu0 0.0
        %988 = vmatpush.msra.mxu0 0.0
        %989 = vmatpush.msra.mxu0 0.0
        %990 = vmatpush.msra.mxu0 0.0
        %991 = vmatpush.msra.mxu0 0.0
        %992 = vmatpush.msra.mxu0 0.0
        %993 = vmatpush.msra.mxu0 0.0
        %994 = vmatpush.msra.mxu0 %v951
        %995 = vmatpush.msra.mxu0 %v949
        %996 = vmatpush.msra.mxu0 %v947
        %997 = vmatmul.f32.gmra.mxu0 %v959
        %v998 = vpop.f32.mrf.mxu0
        %v999 = vadd.f32 0.0, %v998
        %1000 = vdwg.mxu0
        %v1001 = vadd.f32 %v880, %v979
        %v1002 = vadd.f32 %v900, %v999
        %v1003 = vld [vmem:[%s4] sm:$0xff]
        %1005 = vset.pattern.permute.xlu0 0
        %1006 = vperm.xlu0 %1005, %v1003
        %v1007 = vpop.permute.xlu0 %1006
        %v1009 = vadd.f32 %v1001, %v1007
        %v1010 = vadd.f32 %v1002, %v1007
        %v1011 = vadd.f32 %v1009, %v276
        %v1012 = vadd.f32 %v1010, %v277
        %v1013 = vmax.f32 %v1011, 0.0
        %v1014 = vmax.f32 %v1012, 0.0
        %1015 = vst [vmem:[%s275] sm:$0xff] %v1013
        %1016 = vst [vmem:[%s275 + $0x8] sm:$0xff] %v1014
        %s1017 = sand.u32 %s141, 1
        %s1018 = scalar_lea.sflag [#allocation5], %s1017
        %s1019 = sand.u32 %s141, 1
        %s1020 = smul.addr %s1019, 16
        %s1021 = scalar_lea.vmem [#allocation9], %s1020
        // Predicated region
        $region53: #{tpu_custom_call.1} parent=39 // pred_check
          %p1022 = pneg %p151
        $region54: #{tpu_custom_call.1} parent=39 // pred_check_branch
          %1024 = sbr.rel (%p1022) target = $region56
        $region55: #{tpu_custom_call.1} parent=39 // pred_region
          %1026 = vsyncadd %s1018, 0
          %s1027 = smul.addr %s23, 2
          %s1028 = smul.addr %s1027, 8
          %s1029 = scalar_lea.hbm %s5, %s1028
          %s1031 = sshll.u32 %s1021, 4
          %s1032 = int_to_ptr.vmem [resolvable:$true] %s1031
          %s1033 = sshll.u32 %s1029, 4
          %s1034 = int_to_ptr.hbm [resolvable:$true] %s1033
          %1036 = dma.vmem_to_hbm [thread:$0]  %s1032, 256, %s1034, %s1018
        $region56: #{tpu_custom_call.1} parent=39 // pred_fallthru
          _
      $region40: #{tpu_custom_call.1} parent=5 // pred_fallthru
        _
      %p1037 = scmp.le.s32.totalorder 2, %s18
      // Predicated region
      $region57: #{tpu_custom_call.1} parent=5 // pred_check
        %p1038 = pneg %p1037
      $region58: #{tpu_custom_call.1} parent=5 // pred_check_branch
        %1040 = sbr.rel (%p1038) target = $region60
      $region59: #{tpu_custom_call.1} parent=5 // pred_region
        %s1041 = ssub.s32 %s18, 2
        // Predicated region
        $region61: #{tpu_custom_call.1} parent=59 // pred_check
          %p1042 = pneg %p157
        $region62: #{tpu_custom_call.1} parent=59 // pred_check_branch
          %1044 = sbr.rel (%p1042) target = $region64
        $region63: #{tpu_custom_call.1} parent=59 // pred_region
          %s1045 = sand.u32 %s142, 1
          %s1046 = scalar_lea.sflag [#allocation5], %s1045
          %s1047 = sand.u32 %s142, 1
          %s1048 = smul.addr %s1047, 16
          %s1049 = scalar_lea.vmem [#allocation9], %s1048
          %1051 = dma.done %s1046, 256
        $region64: #{tpu_custom_call.1} parent=59 // pred_fallthru
          _
      $region60: #{tpu_custom_call.1} parent=5 // pred_fallthru
        _
    $region6: #{tpu_custom_call.1} parent=1 // loop_footer
      %s22 = sadd.s32 1, %s18
    $region7: #{tpu_custom_call.1} parent=1 // loop_footer_branch
      %17 = sbr.rel target = $region3
    $region8: #{tpu_custom_call.1} parent=1 // loop_exit
      _
    %1052 = vsyncpa [#allocation4], 1
    %s1053 = scalar_lea.sflag [#allocation4], 1
    %1054 = vsyncpa %s1053, 1
    %1055 = vsyncpa [#allocation7], 1
    %1056 = vsyncpa [#allocation5], 1
    %s1057 = scalar_lea.sflag [#allocation5], 1
    %1058 = vsyncpa %s1057, 1

</llo_original>
